<compile_context>
chip_gen: v5e
topology: v5e:2x2
jax: 0.10.0
libtpu: 0.0.40
codegen_flags: <defaults>
</compile_context>

<pallas_src>
import functools

import jax
import jax.numpy as jnp
from jax.experimental import pallas as pl
from jax.experimental.pallas import tpu as pltpu


def _round_up(n, m):
    return ((n + m - 1) // m) * m


def _vpu_supports_bf16():
    """bf16 VALU exists on v6e / v7x; v5e and older emulate it (keep f32 epilogues there)."""
    try:
        kind = jax.devices()[0].device_kind.lower()
    except Exception:
        return False
    return any(tag in kind for tag in ("v6", "v7", "7x", "trillium"))


def _meta_attention_kernel(x_ref, w1_ref, b1_ref, w2_ref, b2_ref, w3_ref, b3_ref, o_ref,
                           *, epi_dtype):
    # x arrives as f32; cast to bf16 in-kernel (hides under the MXU), f32 accumulation.
    x = x_ref[...].astype(jnp.bfloat16)

    # fc1 + ReLU
    h1 = jnp.dot(x, w1_ref[...], preferred_element_type=jnp.float32)
    h1 = jnp.maximum(h1.astype(epi_dtype) + b1_ref[...].astype(epi_dtype), 0.0)

    # fc2 + ReLU
    h2 = jnp.dot(h1.astype(jnp.bfloat16), w2_ref[...], preferred_element_type=jnp.float32)
    h2 = jnp.maximum(h2.astype(epi_dtype) + b2_ref[...].astype(epi_dtype), 0.0)

    # fc3: w3/b3 were pre-scaled by 0.5 on the host, so 2*sigmoid(z) == 1 + tanh(z/2).
    z = jnp.dot(h2.astype(jnp.bfloat16), w3_ref[...], preferred_element_type=jnp.float32)
    o_ref[...] = (1.0 + jnp.tanh(z + b3_ref[...])).astype(o_ref.dtype)


def meta_attention_forward(x, params, *, block_b=None, out_dtype=jnp.bfloat16,
                           bf16_epilogue=None):
    """x: (B, hidden_dim) float32; params: dict of w1,b1,w2,b2,w3,b3 (f32, (in,out) weights)."""
    B, H = x.shape

    if bf16_epilogue is None:
        bf16_epilogue = _vpu_supports_bf16()
    epi_dtype = jnp.bfloat16 if bf16_epilogue else jnp.float32

    # Batch-tile selection:
    #  - B <= 1024: one full-dim tile (full-array block dims are always legal, no padding).
    #  - larger B: 1024-4096 row tiles (multiple of 16), and at least 2 grid steps so the
    #    "parallel" axis can shard across v7x's two TensorCores.
    if block_b is None:
        if B <= 1024:
            block_b = B
        else:
            block_b = min(4096, _round_up(pl.cdiv(B, 2), 16))
    else:
        block_b = _round_up(block_b, 16)
        if block_b >= B:
            block_b = B
    grid = (pl.cdiv(B, block_b),)   # ragged last tile: OOB reads harmless, OOB writes dropped

    w1 = params["w1"].astype(jnp.bfloat16)            # (H, 256)
    w2 = params["w2"].astype(jnp.bfloat16)            # (256, 128)
    w3 = (0.5 * params["w3"]).astype(jnp.bfloat16)    # (128, 128) halved: 2*sigmoid(z)=1+tanh(z/2)
    b1 = params["b1"].astype(jnp.float32)             # (1, 256)
    b2 = params["b2"].astype(jnp.float32)             # (1, 128)
    b3 = (0.5 * params["b3"]).astype(jnp.float32)     # (1, 128) halved

    flops = 2 * B * (H * 256 + 256 * 128 + 128 * 128)
    bytes_accessed = (
        B * H * 4                                     # x (f32, read once, no host pre-pass)
        + (H * 256 + 256 * 128 + 128 * 128) * 2       # weights (bf16)
        + (256 + 128 + 128) * 4                       # biases (f32)
        + B * 128 * jnp.dtype(out_dtype).itemsize     # output
    )
    cost = pl.CostEstimate(flops=flops, transcendentals=B * 128,
                           bytes_accessed=bytes_accessed)

    kernel = functools.partial(_meta_attention_kernel, epi_dtype=epi_dtype)

    return pl.pallas_call(
        kernel,
        out_shape=jax.ShapeDtypeStruct((B, 128), out_dtype),
        grid_spec=pltpu.PrefetchScalarGridSpec(
            num_scalar_prefetch=0,
            grid=grid,
            in_specs=[
                pl.BlockSpec((block_b, H), lambda i: (i, 0)),   # x tile over batch
                pl.BlockSpec((H, 256), lambda i: (0, 0)),       # w1 (grid-invariant, resident)
                pl.BlockSpec((1, 256), lambda i: (0, 0)),       # b1
                pl.BlockSpec((256, 128), lambda i: (0, 0)),     # w2
                pl.BlockSpec((1, 128), lambda i: (0, 0)),       # b2
                pl.BlockSpec((128, 128), lambda i: (0, 0)),     # w3 (pre-halved)
                pl.BlockSpec((1, 128), lambda i: (0, 0)),       # b3 (pre-halved)
            ],
            out_specs=pl.BlockSpec((block_b, 128), lambda i: (i, 0)),
        ),
        compiler_params=pltpu.CompilerParams(
            dimension_semantics=("parallel",),
            # > v5e's 16 MiB scoped default so the big tile lands; < v7x's 64 MiB physical.
            vmem_limit_bytes=48 * 1024 * 1024,
        ),
        cost_estimate=cost,
    )(x, w1, b1, w2, b2, w3, b3)


def init_params(key, hidden_dim):
    """Deterministic init mirroring the PyTorch module:
    kaiming_normal_ for weights (fan_in mode, relu gain), default Linear uniform for biases.
    Weights are stored as (in_features, out_features)."""
    ks = jax.random.split(key, 6)

    def kaiming_normal(k, fan_in, fan_out):
        std = (2.0 / fan_in) ** 0.5
        return std * jax.random.normal(k, (fan_in, fan_out), dtype=jnp.float32)

    def bias_uniform(k, fan_in, fan_out):
        bound = 1.0 / (fan_in ** 0.5)
        return jax.random.uniform(k, (1, fan_out), minval=-bound, maxval=bound,
                                  dtype=jnp.float32)

    return {
        "w1": kaiming_normal(ks[0], hidden_dim, 256),
        "b1": bias_uniform(ks[1], hidden_dim, 256),
        "w2": kaiming_normal(ks[2], 256, 128),
        "b2": bias_uniform(ks[3], 256, 128),
        "w3": kaiming_normal(ks[4], 128, 128),
        "b3": bias_uniform(ks[5], 128, 128),
    }


def _reference(x, p):
    """Pure-JAX reference with the same bf16-operand / f32-accumulate precision as the kernel
    (uses the original, un-halved w3/b3 and the literal 2*sigmoid formulation)."""
    w1 = p["w1"].astype(jnp.bfloat16)
    w2 = p["w2"].astype(jnp.bfloat16)
    w3 = p["w3"].astype(jnp.bfloat16)
    h1 = jnp.maximum(
        jnp.dot(x.astype(jnp.bfloat16), w1, preferred_element_type=jnp.float32) + p["b1"], 0.0)
    h2 = jnp.maximum(
        jnp.dot(h1.astype(jnp.bfloat16), w2, preferred_element_type=jnp.float32) + p["b2"], 0.0)
    h3 = jax.nn.sigmoid(
        jnp.dot(h2.astype(jnp.bfloat16), w3, preferred_element_type=jnp.float32) + p["b3"])
    return 2.0 * h3


if __name__ == "__main__":
    key = jax.random.PRNGKey(0)
    k_param, k1, k2, k3 = jax.random.split(key, 4)

    hidden_dim = 32
    params = init_params(k_param, hidden_dim)

    def check(x, **kw):
        out = jax.block_until_ready(meta_attention_forward(x, params, **kw))
        ref = _reference(x, params)
        assert out.shape == (x.shape[0], 128), out.shape
        outf = out.astype(jnp.float32)
        assert bool(jnp.all(jnp.isfinite(outf))), "non-finite output"
        assert jnp.allclose(outf, ref, atol=2e-2, rtol=2e-2), \
            f"mismatch vs reference (B={x.shape[0]})"

    # 1) Small-shape smoke test (batch=8, hidden=32): single full-dim tile, bf16 output.
    check(jax.random.normal(k1, (8, hidden_dim), dtype=jnp.float32))

    # 2) Single tile with a non-multiple-of-8 batch (block dims == full array dims).
    check(jax.random.normal(k2, (300, hidden_dim), dtype=jnp.float32))

    # 3) Multi-step "parallel" grid with a ragged last tile (grid=3), f32 output path.
    check(jax.random.normal(k3, (1200, hidden_dim), dtype=jnp.float32),
          block_b=512, out_dtype=jnp.float32)

    print("KERNEL_OK")
</pallas_src>

<mosaic_0001>
module attributes {stable_mosaic.version = 11 : i64} {
  func.func @_meta_attention_kernel(%arg0: i32, %arg1: memref<8x32xf32, #tpu.memory_space<vmem>>, %arg2: memref<32x256xbf16, #tpu.memory_space<vmem>>, %arg3: memref<1x256xf32, #tpu.memory_space<vmem>>, %arg4: memref<256x128xbf16, #tpu.memory_space<vmem>>, %arg5: memref<1x128xf32, #tpu.memory_space<vmem>>, %arg6: memref<128x128xbf16, #tpu.memory_space<vmem>>, %arg7: memref<1x128xf32, #tpu.memory_space<vmem>>, %arg8: memref<8x128xbf16, #tpu.memory_space<vmem>>) attributes {dimension_semantics = [#tpu.dimension_semantics<parallel>], iteration_bounds = array<i64: 1>, scalar_prefetch = 0 : i64, scratch_operands = 0 : i64, tpu.core_type = #tpu.core_type<tc>, window_params = [{transform_indices = @transform_0, window_bounds = array<i64: 8, 32>}, {pipeline_mode = #tpu.pipeline_mode<synchronous>, transform_indices = @transform_1, window_bounds = array<i64: 32, 256>}, {pipeline_mode = #tpu.pipeline_mode<synchronous>, transform_indices = @transform_2, window_bounds = array<i64: 1, 256>}, {pipeline_mode = #tpu.pipeline_mode<synchronous>, transform_indices = @transform_3, window_bounds = array<i64: 256, 128>}, {pipeline_mode = #tpu.pipeline_mode<synchronous>, transform_indices = @transform_4, window_bounds = array<i64: 1, 128>}, {pipeline_mode = #tpu.pipeline_mode<synchronous>, transform_indices = @transform_5, window_bounds = array<i64: 128, 128>}, {pipeline_mode = #tpu.pipeline_mode<synchronous>, transform_indices = @transform_6, window_bounds = array<i64: 1, 128>}, {transform_indices = @transform_7, window_bounds = array<i64: 8, 128>}]} {
    %c0 = arith.constant 0 : index
    %c0_0 = arith.constant 0 : index
    %0 = vector.load %arg1[%c0, %c0_0] : memref<8x32xf32, #tpu.memory_space<vmem>>, vector<8x32xf32>
    %1 = arith.truncf %0 : vector<8x32xf32> to vector<8x32xbf16>
    %c0_1 = arith.constant 0 : index
    %c0_2 = arith.constant 0 : index
    %2 = vector.load %arg2[%c0_1, %c0_2] : memref<32x256xbf16, #tpu.memory_space<vmem>>, vector<32x256xbf16>
    %cst = arith.constant dense<0.000000e+00> : vector<8x256xf32>
    %3 = tpu.matmul %1, %2, %cst {dimension_numbers = #tpu.dot_dimension_numbers<[1], [0], [0], [1], [0, 0, 1, 1], [], []>} : vector<8x32xbf16>, vector<32x256xbf16>, vector<8x256xf32> -> vector<8x256xf32>
    %c0_3 = arith.constant 0 : index
    %c0_4 = arith.constant 0 : index
    %4 = vector.load %arg3[%c0_3, %c0_4] : memref<1x256xf32, #tpu.memory_space<vmem>>, vector<1x256xf32>
    %5 = vector.broadcast %4 : vector<1x256xf32> to vector<8x256xf32>
    %6 = arith.addf %3, %5 : vector<8x256xf32>
    %cst_5 = arith.constant 0.000000e+00 : f32
    %7 = vector.broadcast %cst_5 : f32 to vector<8x256xf32>
    %8 = arith.maximumf %6, %7 : vector<8x256xf32>
    %9 = arith.truncf %8 : vector<8x256xf32> to vector<8x256xbf16>
    %c0_6 = arith.constant 0 : index
    %c0_7 = arith.constant 0 : index
    %10 = vector.load %arg4[%c0_6, %c0_7] : memref<256x128xbf16, #tpu.memory_space<vmem>>, vector<256x128xbf16>
    %cst_8 = arith.constant dense<0.000000e+00> : vector<8x128xf32>
    %11 = tpu.matmul %9, %10, %cst_8 {dimension_numbers = #tpu.dot_dimension_numbers<[1], [0], [0], [1], [0, 0, 1, 1], [], []>} : vector<8x256xbf16>, vector<256x128xbf16>, vector<8x128xf32> -> vector<8x128xf32>
    %c0_9 = arith.constant 0 : index
    %c0_10 = arith.constant 0 : index
    %12 = vector.load %arg5[%c0_9, %c0_10] : memref<1x128xf32, #tpu.memory_space<vmem>>, vector<1x128xf32>
    %13 = vector.broadcast %12 : vector<1x128xf32> to vector<8x128xf32>
    %14 = arith.addf %11, %13 : vector<8x128xf32>
    %cst_11 = arith.constant 0.000000e+00 : f32
    %15 = vector.broadcast %cst_11 : f32 to vector<8x128xf32>
    %16 = arith.maximumf %14, %15 : vector<8x128xf32>
    %17 = arith.truncf %16 : vector<8x128xf32> to vector<8x128xbf16>
    %c0_12 = arith.constant 0 : index
    %c0_13 = arith.constant 0 : index
    %18 = vector.load %arg6[%c0_12, %c0_13] : memref<128x128xbf16, #tpu.memory_space<vmem>>, vector<128x128xbf16>
    %cst_14 = arith.constant dense<0.000000e+00> : vector<8x128xf32>
    %19 = tpu.matmul %17, %18, %cst_14 {dimension_numbers = #tpu.dot_dimension_numbers<[1], [0], [0], [1], [0, 0, 1, 1], [], []>} : vector<8x128xbf16>, vector<128x128xbf16>, vector<8x128xf32> -> vector<8x128xf32>
    %c0_15 = arith.constant 0 : index
    %c0_16 = arith.constant 0 : index
    %20 = vector.load %arg7[%c0_15, %c0_16] : memref<1x128xf32, #tpu.memory_space<vmem>>, vector<1x128xf32>
    %21 = vector.broadcast %20 : vector<1x128xf32> to vector<8x128xf32>
    %22 = arith.addf %19, %21 : vector<8x128xf32>
    %23 = math.tanh %22 : vector<8x128xf32>
    %cst_17 = arith.constant 1.000000e+00 : f32
    %24 = vector.broadcast %cst_17 : f32 to vector<8x128xf32>
    %25 = arith.addf %24, %23 : vector<8x128xf32>
    %26 = arith.truncf %25 : vector<8x128xf32> to vector<8x128xbf16>
    %c0_18 = arith.constant 0 : index
    %c0_19 = arith.constant 0 : index
    %27 = vector.load %arg8[%c0_18, %c0_19] : memref<8x128xbf16, #tpu.memory_space<vmem>>, vector<8x128xbf16>
    tpu.vector_store %arg8[%c0_18, %c0_19], %26 {strides = array<i32>} : memref<8x128xbf16, #tpu.memory_space<vmem>>, vector<8x128xbf16>,
    return
  }
  func.func @transform_0(%arg0: i32) -> (i32, i32) {
    %c0_i32 = arith.constant 0 : i32
    %c0_i32_0 = arith.constant 0 : i32
    return %arg0, %c0_i32 : i32, i32
  }
  func.func @transform_1(%arg0: i32) -> (i32, i32) {
    %c0_i32 = arith.constant 0 : i32
    %c0_i32_0 = arith.constant 0 : i32
    %c0_i32_1 = arith.constant 0 : i32
    return %c0_i32, %c0_i32_0 : i32, i32
  }
  func.func @transform_2(%arg0: i32) -> (i32, i32) {
    %c0_i32 = arith.constant 0 : i32
    %c0_i32_0 = arith.constant 0 : i32
    %c0_i32_1 = arith.constant 0 : i32
    return %c0_i32, %c0_i32_0 : i32, i32
  }
  func.func @transform_3(%arg0: i32) -> (i32, i32) {
    %c0_i32 = arith.constant 0 : i32
    %c0_i32_0 = arith.constant 0 : i32
    %c0_i32_1 = arith.constant 0 : i32
    return %c0_i32, %c0_i32_0 : i32, i32
  }
  func.func @transform_4(%arg0: i32) -> (i32, i32) {
    %c0_i32 = arith.constant 0 : i32
    %c0_i32_0 = arith.constant 0 : i32
    %c0_i32_1 = arith.constant 0 : i32
    return %c0_i32, %c0_i32_0 : i32, i32
  }
  func.func @transform_5(%arg0: i32) -> (i32, i32) {
    %c0_i32 = arith.constant 0 : i32
    %c0_i32_0 = arith.constant 0 : i32
    %c0_i32_1 = arith.constant 0 : i32
    return %c0_i32, %c0_i32_0 : i32, i32
  }
  func.func @transform_6(%arg0: i32) -> (i32, i32) {
    %c0_i32 = arith.constant 0 : i32
    %c0_i32_0 = arith.constant 0 : i32
    %c0_i32_1 = arith.constant 0 : i32
    return %c0_i32, %c0_i32_0 : i32, i32
  }
  func.func @transform_7(%arg0: i32) -> (i32, i32) {
    %c0_i32 = arith.constant 0 : i32
    %c0_i32_0 = arith.constant 0 : i32
    return %arg0, %c0_i32 : i32, i32
  }
}

</mosaic_0001>

<llo_original>
// kernel: tpu_custom_call.1
$region0: #{tpu_custom_call.1}
  #allocation0 [shape = 'u32[]', space=smem, size = 0x4, offset = 0x4, fixed_abs, tag = 'smem constant byte address 0x4 - core index']
  #allocation1 [shape = 'u32[72,128]{1,0:T(1,128)}', space=vmem, size = 0x9000, scoped, tag = 'internal scratch']
  %s0 = inlined_call_operand.hbm [shape: f32[8,32], index: 0, kind: input, shape index: {}]
  %s1 = inlined_call_operand.hbm [shape: bf16[32,256], index: 1, kind: input, shape index: {}]
  %s2 = inlined_call_operand.hbm [shape: f32[1,256], index: 2, kind: input, shape index: {}]
  %s3 = inlined_call_operand.hbm [shape: bf16[256,128], index: 3, kind: input, shape index: {}]
  %s4 = inlined_call_operand.vmem [shape: f32[1,128], index: 4, kind: input, shape index: {}]
  %s5 = inlined_call_operand.hbm [shape: bf16[128,128], index: 5, kind: input, shape index: {}]
  %s6 = inlined_call_operand.vmem [shape: f32[1,128], index: 6, kind: input, shape index: {}]
  %s7 = inlined_call_operand.hbm [shape: bf16[8,128], index: 7, kind: output, shape index: {}]
  %s8 = sld [smem:[#allocation0]]
  $region58: #{tpu_custom_call.1} parent=0
    _
  %s10 = ssub.s32 1, %s8
  %s11 = scalar_select 0, %s10, %s8
  $region1: #{tpu_custom_call.1} parent=0
    #allocation2 [shape = 'u8[4096]{0}', space=vmem, size = 0x1000, scoped, tag = 'input window, operand 0, single buffered']
    #allocation3 [shape = 's32[1]{0}', space=sflag, size = 0x4, scoped, tag = 'scoped memory for tpu_custom_call.1']
    #allocation4 [shape = 's32[1]{0}', space=sflag, size = 0x4, scoped, tag = 'scoped memory for tpu_custom_call.1']
    #allocation5 [shape = 'u8[16384]{0}', space=vmem, size = 0x4000, scoped, tag = 'input window, operand 1, single buffered']
    #allocation6 [shape = 's32[1]{0}', space=sflag, size = 0x4, scoped, tag = 'scoped memory for tpu_custom_call.1']
    #allocation7 [shape = 'u8[1024]{0}', space=vmem, size = 0x400, scoped, tag = 'input window, operand 2, single buffered']
    #allocation8 [shape = 'u8[65536]{0}', space=vmem, size = 0x10000, scoped, tag = 'input window, operand 3, single buffered']
    #allocation9 [shape = 's32[1]{0}', space=sflag, size = 0x4, scoped, tag = 'scoped memory for tpu_custom_call.1']
    #allocation10 [shape = 'u8[32768]{0}', space=vmem, size = 0x8000, scoped, tag = 'input window, operand 5, single buffered']
    #allocation11 [shape = 'u8[2048]{0}', space=vmem, size = 0x800, scoped, tag = 'output window, operand 0, single buffered']
    %12 = vsyncpa [#allocation3], 0
    %13 = vsyncpa [#allocation6], 0
    %14 = vsyncpa [#allocation9], 0
    %15 = vsyncpa [#allocation4], 0
    // Predicated region
    $region2: #{tpu_custom_call.1} parent=1 // pred_check
      _
    $region3: #{tpu_custom_call.1} parent=1 // pred_check_branch
      %17 = sbr.rel (0) target = $region5
    $region4: #{tpu_custom_call.1} parent=1 // pred_region
      %19 = vsyncadd [#allocation3], 0
      %s21 = sshll.u32 %s0, 4
      %s22 = int_to_ptr.hbm [resolvable:$true] %s21
      %s23 = sshll.u32 [#allocation2], 4
      %s24 = int_to_ptr.vmem [resolvable:$true] %s23
      %26 = dma.hbm_to_vmem [thread:$0]  %s22, 128, %s24, [#allocation3]
    $region5: #{tpu_custom_call.1} parent=1 // pred_fallthru
      _
    // Predicated region
    $region6: #{tpu_custom_call.1} parent=1 // pred_check
      _
    $region7: #{tpu_custom_call.1} parent=1 // pred_check_branch
      %28 = sbr.rel (0) target = $region9
    $region8: #{tpu_custom_call.1} parent=1 // pred_region
      %30 = vsyncadd [#allocation6], 0
      %s31 = sshll.u32 %s1, 4
      %s32 = int_to_ptr.hbm [resolvable:$true] %s31
      %s33 = sshll.u32 [#allocation5], 4
      %s34 = int_to_ptr.vmem [resolvable:$true] %s33
      %39 = dma.hbm_to_vmem [thread:$0]  %s32, 512, %s34, [#allocation6], 128, 128, 8
    $region9: #{tpu_custom_call.1} parent=1 // pred_fallthru
      _
    // Predicated region
    $region10: #{tpu_custom_call.1} parent=1 // pred_check
      _
    $region11: #{tpu_custom_call.1} parent=1 // pred_check_branch
      %41 = sbr.rel (0) target = $region13
    $region12: #{tpu_custom_call.1} parent=1 // pred_region
      %43 = vsyncadd [#allocation6], 0
      %s45 = sshll.u32 %s2, 4
      %s46 = int_to_ptr.hbm [resolvable:$true] %s45
      %s47 = sshll.u32 [#allocation7], 4
      %s48 = int_to_ptr.vmem [resolvable:$true] %s47
      %50 = dma.hbm_to_vmem [thread:$0]  %s46, 32, %s48, [#allocation6]
    $region13: #{tpu_custom_call.1} parent=1 // pred_fallthru
      _
    // Predicated region
    $region14: #{tpu_custom_call.1} parent=1 // pred_check
      _
    $region15: #{tpu_custom_call.1} parent=1 // pred_check_branch
      %52 = sbr.rel (0) target = $region17
    $region16: #{tpu_custom_call.1} parent=1 // pred_region
      %54 = vsyncadd [#allocation9], 0
      %s55 = sshll.u32 %s3, 4
      %s56 = int_to_ptr.hbm [resolvable:$true] %s55
      %s57 = sshll.u32 [#allocation8], 4
      %s58 = int_to_ptr.vmem [resolvable:$true] %s57
      %63 = dma.hbm_to_vmem [thread:$0]  %s56, 2048, %s58, [#allocation9], 64, 64, 4
    $region17: #{tpu_custom_call.1} parent=1 // pred_fallthru
      _
    // Predicated region
    $region18: #{tpu_custom_call.1} parent=1 // pred_check
      _
    $region19: #{tpu_custom_call.1} parent=1 // pred_check_branch
      %65 = sbr.rel (0) target = $region21
    $region20: #{tpu_custom_call.1} parent=1 // pred_region
      _
    $region21: #{tpu_custom_call.1} parent=1 // pred_fallthru
      _
    // Predicated region
    $region22: #{tpu_custom_call.1} parent=1 // pred_check
      _
    $region23: #{tpu_custom_call.1} parent=1 // pred_check_branch
      %67 = sbr.rel (0) target = $region25
    $region24: #{tpu_custom_call.1} parent=1 // pred_region
      %69 = vsyncadd [#allocation9], 0
      %s70 = sshll.u32 %s5, 4
      %s71 = int_to_ptr.hbm [resolvable:$true] %s70
      %s72 = sshll.u32 [#allocation10], 4
      %s73 = int_to_ptr.vmem [resolvable:$true] %s72
      %78 = dma.hbm_to_vmem [thread:$0]  %s71, 1024, %s73, [#allocation9], 64, 64, 4
    $region25: #{tpu_custom_call.1} parent=1 // pred_fallthru
      _
    // Predicated region
    $region26: #{tpu_custom_call.1} parent=1 // pred_check
      _
    $region27: #{tpu_custom_call.1} parent=1 // pred_check_branch
      %80 = sbr.rel (0) target = $region29
    $region28: #{tpu_custom_call.1} parent=1 // pred_region
      _
    $region29: #{tpu_custom_call.1} parent=1 // pred_fallthru
      _
    // Predicated region
    $region30: #{tpu_custom_call.1} parent=1 // pred_check
      _
    $region31: #{tpu_custom_call.1} parent=1 // pred_check_branch
      %82 = sbr.rel (0) target = $region33
    $region32: #{tpu_custom_call.1} parent=1 // pred_region
      %84 = dma.done [#allocation3], 128
    $region33: #{tpu_custom_call.1} parent=1 // pred_fallthru
      _
    // Predicated region
    $region34: #{tpu_custom_call.1} parent=1 // pred_check
      _
    $region35: #{tpu_custom_call.1} parent=1 // pred_check_branch
      %86 = sbr.rel (0) target = $region37
    $region36: #{tpu_custom_call.1} parent=1 // pred_region
      %88 = dma.done [#allocation6], 512
    $region37: #{tpu_custom_call.1} parent=1 // pred_fallthru
      _
    // Predicated region
    $region38: #{tpu_custom_call.1} parent=1 // pred_check
      _
    $region39: #{tpu_custom_call.1} parent=1 // pred_check_branch
      %90 = sbr.rel (0) target = $region41
    $region40: #{tpu_custom_call.1} parent=1 // pred_region
      %92 = dma.done [#allocation6], 32
    $region41: #{tpu_custom_call.1} parent=1 // pred_fallthru
      _
    // Predicated region
    $region42: #{tpu_custom_call.1} parent=1 // pred_check
      _
    $region43: #{tpu_custom_call.1} parent=1 // pred_check_branch
      %94 = sbr.rel (0) target = $region45
    $region44: #{tpu_custom_call.1} parent=1 // pred_region
      %96 = dma.done [#allocation9], 2048
    $region45: #{tpu_custom_call.1} parent=1 // pred_fallthru
      _
    // Predicated region
    $region46: #{tpu_custom_call.1} parent=1 // pred_check
      _
    $region47: #{tpu_custom_call.1} parent=1 // pred_check_branch
      %98 = sbr.rel (0) target = $region49
    $region48: #{tpu_custom_call.1} parent=1 // pred_region
      %100 = dma.done [#allocation9], 1024
    $region49: #{tpu_custom_call.1} parent=1 // pred_fallthru
      _
    %v102 = vld [vmem:[#allocation2] sm:$0xff]
    %v103 = vpack.c.bf16 %v102, %v102
    %v104 = vld [vmem:[#allocation5] sm:$0xff]
    %v105 = vld [vmem:[#allocation5 + $0x8] sm:$0xff]
    %v106 = vld [vmem:[#allocation5 + $0x10] sm:$0xff]
    %v107 = vld [vmem:[#allocation5 + $0x18] sm:$0xff]
    %v108 = vld [vmem:[#allocation7] sm:$0x3]
    %v110 = vperm.slane %v108, 0
    %v111 = vperm.slane %v108, 1
    %v118 = vunpack.c.l.b16 %v104
    %v119 = vunpack.c.h.b16 %v104
    %v120 = vunpack.c.l.b16 %v105
    %v121 = vunpack.c.h.b16 %v105
    %v122 = vunpack.c.l.b16 %v106
    %v123 = vunpack.c.h.b16 %v106
    %v124 = vunpack.c.l.b16 %v107
    %v125 = vunpack.c.h.b16 %v107
    %v126 = vpack.c.b16 %v120, %v118
    %v127 = vpack.c.b16 %v121, %v119
    %v128 = vpack.c.b16 %v124, %v122
    %v129 = vpack.c.b16 %v125, %v123
    %vm134 = vcmask 261120
    %v136 = vsel %vm134, %v103, 0
    %138 = vmatpush.bf16.msra.mxu0 0
    %139 = vmatpush.bf16.msra.mxu0 0
    %140 = vmatpush.bf16.msra.mxu0 0
    %141 = vmatpush.bf16.msra.mxu0 0
    %142 = vmatpush.bf16.msra.mxu0 0
    %143 = vmatpush.bf16.msra.mxu0 0
    %144 = vmatpush.bf16.msra.mxu0 %v128
    %145 = vmatpush.bf16.msra.mxu0 %v126
    %146 = vmatmul.bf16.gmra.mxu0 %v136
    %v147 = vpop.f32.mrf.mxu0
    %v148 = vadd.f32 %v110, %v147
    %v149 = vpop.f32.mrf.mxu0
    %150 = vdwg.mxu0
    %151 = vmatpush.bf16.msra.mxu0 0
    %152 = vmatpush.bf16.msra.mxu0 0
    %153 = vmatpush.bf16.msra.mxu0 0
    %154 = vmatpush.bf16.msra.mxu0 0
    %155 = vmatpush.bf16.msra.mxu0 0
    %156 = vmatpush.bf16.msra.mxu0 0
    %157 = vmatpush.bf16.msra.mxu0 %v129
    %158 = vmatpush.bf16.msra.mxu0 %v127
    %159 = vmatmul.bf16.gmra.mxu0 %v136
    %v160 = vpop.f32.mrf.mxu0
    %v161 = vadd.f32 %v111, %v160
    %v162 = vpop.f32.mrf.mxu0
    %163 = vdwg.mxu0
    %v164 = vmax.f32 %v148, 0.0
    %v165 = vmax.f32 %v161, 0.0
    %v166 = vpack.c.bf16 %v164, %v164
    %v167 = vpack.c.bf16 %v165, %v165
    %v168 = vld [vmem:[#allocation8] sm:$0xf]
    %v169 = vld [vmem:[#allocation8 + $0x4] sm:$0xf]
    %v170 = vld [vmem:[#allocation8 + $0x8] sm:$0xf]
    %v171 = vld [vmem:[#allocation8 + $0xc] sm:$0xf]
    %v172 = vld [vmem:[#allocation8 + $0x10] sm:$0xf]
    %v173 = vld [vmem:[#allocation8 + $0x14] sm:$0xf]
    %v174 = vld [vmem:[#allocation8 + $0x18] sm:$0xf]
    %v175 = vld [vmem:[#allocation8 + $0x1c] sm:$0xf]
    %v176 = vld [vmem:[#allocation8 + $0x20] sm:$0xf]
    %v177 = vld [vmem:[#allocation8 + $0x24] sm:$0xf]
    %v178 = vld [vmem:[#allocation8 + $0x28] sm:$0xf]
    %v179 = vld [vmem:[#allocation8 + $0x2c] sm:$0xf]
    %v180 = vld [vmem:[#allocation8 + $0x30] sm:$0xf]
    %v181 = vld [vmem:[#allocation8 + $0x34] sm:$0xf]
    %v182 = vld [vmem:[#allocation8 + $0x38] sm:$0xf]
    %v183 = vld [vmem:[#allocation8 + $0x3c] sm:$0xf]
    %v184 = vld [vmem:[#allocation8 + $0x40] sm:$0xf]
    %v185 = vld [vmem:[#allocation8 + $0x44] sm:$0xf]
    %v186 = vld [vmem:[#allocation8 + $0x48] sm:$0xf]
    %v187 = vld [vmem:[#allocation8 + $0x4c] sm:$0xf]
    %v188 = vld [vmem:[#allocation8 + $0x50] sm:$0xf]
    %v189 = vld [vmem:[#allocation8 + $0x54] sm:$0xf]
    %v190 = vld [vmem:[#allocation8 + $0x58] sm:$0xf]
    %v191 = vld [vmem:[#allocation8 + $0x5c] sm:$0xf]
    %v192 = vld [vmem:[#allocation8 + $0x60] sm:$0xf]
    %v193 = vld [vmem:[#allocation8 + $0x64] sm:$0xf]
    %v194 = vld [vmem:[#allocation8 + $0x68] sm:$0xf]
    %v195 = vld [vmem:[#allocation8 + $0x6c] sm:$0xf]
    %v196 = vld [vmem:[#allocation8 + $0x70] sm:$0xf]
    %v197 = vld [vmem:[#allocation8 + $0x74] sm:$0xf]
    %v198 = vld [vmem:[#allocation8 + $0x78] sm:$0xf]
    %v199 = vld [vmem:[#allocation8 + $0x7c] sm:$0xf]
    %v200 = vld [vmem:[%s4] sm:$0x1]
    %v202 = vperm.slane %v200, 0
    %v236 = vunpack.c.l.b16 %v168
    %v237 = vunpack.c.l.b16 %v169
    %v238 = vunpack.c.l.b16 %v170
    %v239 = vunpack.c.l.b16 %v171
    %v240 = vunpack.c.l.b16 %v172
    %v241 = vunpack.c.l.b16 %v173
    %v242 = vunpack.c.l.b16 %v174
    %v243 = vunpack.c.l.b16 %v175
    %v244 = vunpack.c.l.b16 %v176
    %v245 = vunpack.c.l.b16 %v177
    %v246 = vunpack.c.l.b16 %v178
    %v247 = vunpack.c.l.b16 %v179
    %v248 = vunpack.c.l.b16 %v180
    %v249 = vunpack.c.l.b16 %v181
    %v250 = vunpack.c.l.b16 %v182
    %v251 = vunpack.c.l.b16 %v183
    %v252 = vunpack.c.l.b16 %v184
    %v253 = vunpack.c.l.b16 %v185
    %v254 = vunpack.c.l.b16 %v186
    %v255 = vunpack.c.l.b16 %v187
    %v256 = vunpack.c.l.b16 %v188
    %v257 = vunpack.c.l.b16 %v189
    %v258 = vunpack.c.l.b16 %v190
    %v259 = vunpack.c.l.b16 %v191
    %v260 = vunpack.c.l.b16 %v192
    %v261 = vunpack.c.l.b16 %v193
    %v262 = vunpack.c.l.b16 %v194
    %v263 = vunpack.c.l.b16 %v195
    %v264 = vunpack.c.l.b16 %v196
    %v265 = vunpack.c.l.b16 %v197
    %v266 = vunpack.c.l.b16 %v198
    %v267 = vunpack.c.l.b16 %v199
    %v268 = vpack.c.b16 %v237, %v236
    %v269 = vpack.c.b16 %v239, %v238
    %v270 = vpack.c.b16 %v241, %v240
    %v271 = vpack.c.b16 %v243, %v242
    %v272 = vpack.c.b16 %v245, %v244
    %v273 = vpack.c.b16 %v247, %v246
    %v274 = vpack.c.b16 %v249, %v248
    %v275 = vpack.c.b16 %v251, %v250
    %v276 = vpack.c.b16 %v253, %v252
    %v277 = vpack.c.b16 %v255, %v254
    %v278 = vpack.c.b16 %v257, %v256
    %v279 = vpack.c.b16 %v259, %v258
    %v280 = vpack.c.b16 %v261, %v260
    %v281 = vpack.c.b16 %v263, %v262
    %v282 = vpack.c.b16 %v265, %v264
    %v283 = vpack.c.b16 %v267, %v266
    %300 = vmatpush.bf16.msra.mxu0 %v275
    %301 = vmatpush.bf16.msra.mxu0 %v274
    %302 = vmatpush.bf16.msra.mxu0 %v273
    %303 = vmatpush.bf16.msra.mxu0 %v272
    %304 = vmatpush.bf16.msra.mxu0 %v271
    %305 = vmatpush.bf16.msra.mxu0 %v270
    %306 = vmatpush.bf16.msra.mxu0 %v269
    %307 = vmatpush.bf16.msra.mxu0 %v268
    %308 = vmatmul.bf16.gmra.mxu0 %v166
    %v309 = vpop.f32.mrf.mxu0
    %v310 = vadd.f32 %v202, %v309
    %v311 = vpop.f32.mrf.mxu0
    %312 = vdwg.mxu0
    %313 = vmatpush.bf16.msra.mxu0 %v283
    %314 = vmatpush.bf16.msra.mxu0 %v282
    %315 = vmatpush.bf16.msra.mxu0 %v281
    %316 = vmatpush.bf16.msra.mxu0 %v280
    %317 = vmatpush.bf16.msra.mxu0 %v279
    %318 = vmatpush.bf16.msra.mxu0 %v278
    %319 = vmatpush.bf16.msra.mxu0 %v277
    %320 = vmatpush.bf16.msra.mxu0 %v276
    %321 = vmatmul.bf16.gmra.mxu0 %v167
    %v322 = vpop.f32.mrf.mxu0
    %v323 = vadd.f32 %v310, %v322
    %v324 = vpop.f32.mrf.mxu0
    %325 = vdwg.mxu0
    %v326 = vmax.f32 %v323, 0.0
    %v327 = vpack.c.bf16 %v326, %v326
    %v328 = vld [vmem:[#allocation10] sm:$0xf]
    %v329 = vld [vmem:[#allocation10 + $0x4] sm:$0xf]
    %v330 = vld [vmem:[#allocation10 + $0x8] sm:$0xf]
    %v331 = vld [vmem:[#allocation10 + $0xc] sm:$0xf]
    %v332 = vld [vmem:[#allocation10 + $0x10] sm:$0xf]
    %v333 = vld [vmem:[#allocation10 + $0x14] sm:$0xf]
    %v334 = vld [vmem:[#allocation10 + $0x18] sm:$0xf]
    %v335 = vld [vmem:[#allocation10 + $0x1c] sm:$0xf]
    %v336 = vld [vmem:[#allocation10 + $0x20] sm:$0xf]
    %v337 = vld [vmem:[#allocation10 + $0x24] sm:$0xf]
    %v338 = vld [vmem:[#allocation10 + $0x28] sm:$0xf]
    %v339 = vld [vmem:[#allocation10 + $0x2c] sm:$0xf]
    %v340 = vld [vmem:[#allocation10 + $0x30] sm:$0xf]
    %v341 = vld [vmem:[#allocation10 + $0x34] sm:$0xf]
    %v342 = vld [vmem:[#allocation10 + $0x38] sm:$0xf]
    %v343 = vld [vmem:[#allocation10 + $0x3c] sm:$0xf]
    %v344 = vld [vmem:[%s6] sm:$0x1]
    %v346 = vperm.slane %v344, 0
    %v364 = vunpack.c.l.b16 %v328
    %v365 = vunpack.c.l.b16 %v329
    %v366 = vunpack.c.l.b16 %v330
    %v367 = vunpack.c.l.b16 %v331
    %v368 = vunpack.c.l.b16 %v332
    %v369 = vunpack.c.l.b16 %v333
    %v370 = vunpack.c.l.b16 %v334
    %v371 = vunpack.c.l.b16 %v335
    %v372 = vunpack.c.l.b16 %v336
    %v373 = vunpack.c.l.b16 %v337
    %v374 = vunpack.c.l.b16 %v338
    %v375 = vunpack.c.l.b16 %v339
    %v376 = vunpack.c.l.b16 %v340
    %v377 = vunpack.c.l.b16 %v341
    %v378 = vunpack.c.l.b16 %v342
    %v379 = vunpack.c.l.b16 %v343
    %v380 = vpack.c.b16 %v365, %v364
    %v381 = vpack.c.b16 %v367, %v366
    %v382 = vpack.c.b16 %v369, %v368
    %v383 = vpack.c.b16 %v371, %v370
    %v384 = vpack.c.b16 %v373, %v372
    %v385 = vpack.c.b16 %v375, %v374
    %v386 = vpack.c.b16 %v377, %v376
    %v387 = vpack.c.b16 %v379, %v378
    %396 = vmatpush.bf16.msra.mxu0 %v387
    %397 = vmatpush.bf16.msra.mxu0 %v386
    %398 = vmatpush.bf16.msra.mxu0 %v385
    %399 = vmatpush.bf16.msra.mxu0 %v384
    %400 = vmatpush.bf16.msra.mxu0 %v383
    %401 = vmatpush.bf16.msra.mxu0 %v382
    %402 = vmatpush.bf16.msra.mxu0 %v381
    %403 = vmatpush.bf16.msra.mxu0 %v380
    %404 = vmatmul.bf16.gmra.mxu0 %v327
    %v405 = vpop.f32.mrf.mxu0
    %v406 = vadd.f32 %v346, %v405
    %v407 = vpop.f32.mrf.mxu0
    %408 = vdwg.mxu0
    %v409 = vtanh.pop %v406
    %v410 = vadd.f32 %v409, 1.0
    %v411 = vpack.c.bf16 %v410, %v410
    %412 = vst [vmem:[#allocation11] sm:$0xf] %v411
    // Predicated region
    $region50: #{tpu_custom_call.1} parent=1 // pred_check
      _
    $region51: #{tpu_custom_call.1} parent=1 // pred_check_branch
      %414 = sbr.rel (0) target = $region53
    $region52: #{tpu_custom_call.1} parent=1 // pred_region
      %416 = vsyncadd [#allocation4], 0
      %s418 = sshll.u32 [#allocation11], 4
      %s419 = int_to_ptr.vmem [resolvable:$true] %s418
      %s420 = sshll.u32 %s7, 4
      %s421 = int_to_ptr.hbm [resolvable:$true] %s420
      %423 = dma.vmem_to_hbm [thread:$0]  %s419, 64, %s421, [#allocation4]
    $region53: #{tpu_custom_call.1} parent=1 // pred_fallthru
      _
    // Predicated region
    $region54: #{tpu_custom_call.1} parent=1 // pred_check
      _
    $region55: #{tpu_custom_call.1} parent=1 // pred_check_branch
      %425 = sbr.rel (0) target = $region57
    $region56: #{tpu_custom_call.1} parent=1 // pred_region
      %427 = dma.done [#allocation4], 64
    $region57: #{tpu_custom_call.1} parent=1 // pred_fallthru
      _
    %428 = vsyncpa [#allocation3], 1
    %429 = vsyncpa [#allocation6], 1
    %430 = vsyncpa [#allocation9], 1
    %431 = vsyncpa [#allocation4], 1

</llo_original>
